<compile_context>
chip_gen: v6e
topology: v6e:2x2x1
jax: 0.10.0
libtpu: 0.0.40
codegen_flags: <defaults>
</compile_context>

<pallas_src>
import numpy as np
import jax
import jax.numpy as jnp
from jax.experimental import pallas as pl
from jax.experimental.pallas import tpu as pltpu


def _fused_kernel(params_ref, v1_ref, v2_ref, out_ref):
    # params_ref (SMEM scalar prefetch): [w1, b1, w2, b2]
    w1 = params_ref[0]
    b1 = params_ref[1]
    w2 = params_ref[2]
    b2 = params_ref[3]

    v1 = v1_ref[...]                                   # (1, C, TS)
    v2 = v2_ref[...]                                   # (1, C, TS)

    # channel reduction (sublane reduce on the XLU slot)
    sim = jnp.sum(v1 * v2, axis=1, keepdims=True)      # (1, 1, TS)

    # 1x1x1 Conv3d == scalar affine; sigmoid only on the reduced tile
    att1 = jax.nn.sigmoid(sim * w1 + b1)               # (1, 1, TS)
    att2 = jax.nn.sigmoid(sim * w2 + b2)               # (1, 1, TS)

    out_ref[...] = v1 * att1 + v2 * att2               # broadcast over channels


def _choose_spatial_tile(S, C, itemsize,
                         vmem_budget_bytes=24 * 1024 * 1024,
                         max_ts=8192):
    """Largest lane-dense spatial tile that fits the per-step VMEM budget.

    Per grid step VMEM ~= 3 arrays (v1, v2, out) x 2 pipeline buffers x
    (C padded to 8 sublanes) x TS x itemsize.
    """
    c_pad = ((C + 7) // 8) * 8
    ts_by_vmem = vmem_budget_bytes // (6 * c_pad * itemsize)
    ts = min(max_ts, int(ts_by_vmem))
    ts = max(128, (ts // 128) * 128)                   # multiple of 128 lanes
    s_pad128 = ((S + 127) // 128) * 128
    return min(ts, s_pad128)


def transposed_and_add_weighted(x1, x2, params, view1_order, view2_order):
    # --- module-mandated glue: undo the view permutations -------------------
    p1 = tuple(np.argsort(view1_order))
    p2 = tuple(np.argsort(view2_order))
    v1 = jnp.transpose(x1, p1)                         # (N, C, D, H, W)
    v2 = jnp.transpose(x2, p2)                         # (N, C, D, H, W)
    N, C, D, H, W = v1.shape
    S = D * H * W

    # free reshapes (contiguous layout): no extra HBM traffic
    v1f = v1.reshape(N, C, S)
    v2f = v2.reshape(N, C, S)

    itemsize = jnp.dtype(v1f.dtype).itemsize
    TS = _choose_spatial_tile(S, C, itemsize)
    num_s_tiles = pl.cdiv(S, TS)
    S_pad = num_s_tiles * TS
    if S_pad != S:
        pad = ((0, 0), (0, 0), (0, S_pad - S))
        v1f = jnp.pad(v1f, pad)
        v2f = jnp.pad(v2f, pad)

    out_flat = pl.pallas_call(
        _fused_kernel,
        out_shape=jax.ShapeDtypeStruct((N, C, S_pad), v1f.dtype),
        grid_spec=pltpu.PrefetchScalarGridSpec(
            num_scalar_prefetch=1,
            grid=(N, num_s_tiles),
            in_specs=[
                pl.BlockSpec((1, C, TS), lambda n, s, params: (n, 0, s)),
                pl.BlockSpec((1, C, TS), lambda n, s, params: (n, 0, s)),
            ],
            out_specs=pl.BlockSpec((1, C, TS), lambda n, s, params: (n, 0, s)),
        ),
        compiler_params=pltpu.CompilerParams(
            dimension_semantics=("parallel", "parallel"),
            vmem_limit_bytes=32 * 1024 * 1024,
        ),
    )(params, v1f, v2f)

    if S_pad != S:
        out_flat = out_flat[:, :, :S]
    # free reshape back to NCDHW
    return out_flat.reshape(N, C, D, H, W)


def reference(x1, x2, params, view1_order, view2_order):
    """Pure-JAX reference mirroring the PyTorch forward."""
    p1 = tuple(np.argsort(view1_order))
    p2 = tuple(np.argsort(view2_order))
    v1 = jnp.transpose(x1, p1)
    v2 = jnp.transpose(x2, p2)
    sim = jnp.sum(v1 * v2, axis=1, keepdims=True)
    att1 = jax.nn.sigmoid(sim * params[0] + params[1])
    att2 = jax.nn.sigmoid(sim * params[2] + params[3])
    return v1 * att1 + v2 * att2


if __name__ == "__main__":
    key = jax.random.PRNGKey(0)
    k1, k2, k3 = jax.random.split(key, 3)

    # canonical NCDHW shape
    N, C, D, H, W = 2, 4, 4, 8, 16

    view1_order = (0, 2, 1, 3, 4)
    view2_order = (0, 1, 2, 4, 3)

    v1_canon = jax.random.normal(k1, (N, C, D, H, W), dtype=jnp.float32)
    v2_canon = jax.random.normal(k2, (N, C, D, H, W), dtype=jnp.float32)

    # the module receives already-permuted views
    x1 = jnp.transpose(v1_canon, view1_order)
    x2 = jnp.transpose(v2_canon, view2_order)

    # deterministic 1x1x1 Conv3d params: [w1, b1, w2, b2]
    params = jax.random.normal(k3, (4,), dtype=jnp.float32) * 0.5

    out = transposed_and_add_weighted(x1, x2, params, view1_order, view2_order)
    out = jax.block_until_ready(out)

    ref = reference(x1, x2, params, view1_order, view2_order)
    np.testing.assert_allclose(np.asarray(out), np.asarray(ref),
                               rtol=1e-5, atol=1e-5)

    print("KERNEL_OK")
</pallas_src>

<mosaic_0001>
module attributes {stable_mosaic.version = 11 : i64} {
  func.func @_fused_kernel(%arg0: i32, %arg1: i32, %arg2: memref<4xf32, #tpu.memory_space<smem>>, %arg3: memref<1x4x512xf32, #tpu.memory_space<vmem>>, %arg4: memref<1x4x512xf32, #tpu.memory_space<vmem>>, %arg5: memref<1x4x512xf32, #tpu.memory_space<vmem>>) attributes {dimension_semantics = [#tpu.dimension_semantics<parallel>, #tpu.dimension_semantics<parallel>], iteration_bounds = array<i64: 2, 1>, scalar_prefetch = 1 : i64, scratch_operands = 0 : i64, tpu.core_type = #tpu.core_type<tc>, window_params = [{transform_indices = @transform_0, window_bounds = array<i64: 1, 4, 512>}, {transform_indices = @transform_1, window_bounds = array<i64: 1, 4, 512>}, {transform_indices = @transform_2, window_bounds = array<i64: 1, 4, 512>}]} {
    %c0 = arith.constant 0 : index
    %0 = memref.load %arg2[%c0] : memref<4xf32, #tpu.memory_space<smem>>
    %c1 = arith.constant 1 : index
    %1 = memref.load %arg2[%c1] : memref<4xf32, #tpu.memory_space<smem>>
    %c2 = arith.constant 2 : index
    %2 = memref.load %arg2[%c2] : memref<4xf32, #tpu.memory_space<smem>>
    %c3 = arith.constant 3 : index
    %3 = memref.load %arg2[%c3] : memref<4xf32, #tpu.memory_space<smem>>
    %c0_0 = arith.constant 0 : index
    %c0_1 = arith.constant 0 : index
    %c0_2 = arith.constant 0 : index
    %4 = vector.load %arg3[%c0_0, %c0_1, %c0_2] : memref<1x4x512xf32, #tpu.memory_space<vmem>>, vector<1x4x512xf32>
    %c0_3 = arith.constant 0 : index
    %c0_4 = arith.constant 0 : index
    %c0_5 = arith.constant 0 : index
    %5 = vector.load %arg4[%c0_3, %c0_4, %c0_5] : memref<1x4x512xf32, #tpu.memory_space<vmem>>, vector<1x4x512xf32>
    %6 = arith.mulf %4, %5 : vector<1x4x512xf32>
    %cst = arith.constant dense<0.000000e+00> : vector<1x512xf32>
    %7 = vector.multi_reduction <add>, %6, %cst [1] : vector<1x4x512xf32> to vector<1x512xf32>
    %8 = vector.shape_cast %7 : vector<1x512xf32> to vector<1x1x512xf32>
    %9 = vector.broadcast %0 : f32 to vector<1x1x512xf32>
    %10 = arith.mulf %8, %9 : vector<1x1x512xf32>
    %11 = vector.broadcast %1 : f32 to vector<1x1x512xf32>
    %12 = arith.addf %10, %11 : vector<1x1x512xf32>
    %13 = arith.negf %12 : vector<1x1x512xf32>
    %14 = math.exp %13 : vector<1x1x512xf32>
    %cst_6 = arith.constant 1.000000e+00 : f32
    %15 = vector.broadcast %cst_6 : f32 to vector<1x1x512xf32>
    %16 = arith.addf %15, %14 : vector<1x1x512xf32>
    %17 = arith.divf %15, %16 : vector<1x1x512xf32>
    %18 = vector.broadcast %2 : f32 to vector<1x1x512xf32>
    %19 = arith.mulf %8, %18 : vector<1x1x512xf32>
    %20 = vector.broadcast %3 : f32 to vector<1x1x512xf32>
    %21 = arith.addf %19, %20 : vector<1x1x512xf32>
    %22 = arith.negf %21 : vector<1x1x512xf32>
    %23 = math.exp %22 : vector<1x1x512xf32>
    %cst_7 = arith.constant 1.000000e+00 : f32
    %24 = vector.broadcast %cst_7 : f32 to vector<1x1x512xf32>
    %25 = arith.addf %24, %23 : vector<1x1x512xf32>
    %26 = arith.divf %24, %25 : vector<1x1x512xf32>
    %27 = vector.broadcast %17 : vector<1x1x512xf32> to vector<1x4x512xf32>
    %28 = arith.mulf %4, %27 : vector<1x4x512xf32>
    %29 = vector.broadcast %26 : vector<1x1x512xf32> to vector<1x4x512xf32>
    %30 = arith.mulf %5, %29 : vector<1x4x512xf32>
    %31 = arith.addf %28, %30 : vector<1x4x512xf32>
    %c0_8 = arith.constant 0 : index
    %c0_9 = arith.constant 0 : index
    %c0_10 = arith.constant 0 : index
    %32 = vector.load %arg5[%c0_8, %c0_9, %c0_10] : memref<1x4x512xf32, #tpu.memory_space<vmem>>, vector<1x4x512xf32>
    tpu.vector_store %arg5[%c0_8, %c0_9, %c0_10], %31 {strides = array<i32>} : memref<1x4x512xf32, #tpu.memory_space<vmem>>, vector<1x4x512xf32>,
    return
  }
  func.func @transform_0(%arg0: i32, %arg1: i32, %arg2: memref<4xf32, #tpu.memory_space<smem>>) -> (i32, i32, i32) {
    %c0_i32 = arith.constant 0 : i32
    %c0_i32_0 = arith.constant 0 : i32
    return %arg0, %c0_i32, %arg1 : i32, i32, i32
  }
  func.func @transform_1(%arg0: i32, %arg1: i32, %arg2: memref<4xf32, #tpu.memory_space<smem>>) -> (i32, i32, i32) {
    %c0_i32 = arith.constant 0 : i32
    %c0_i32_0 = arith.constant 0 : i32
    return %arg0, %c0_i32, %arg1 : i32, i32, i32
  }
  func.func @transform_2(%arg0: i32, %arg1: i32, %arg2: memref<4xf32, #tpu.memory_space<smem>>) -> (i32, i32, i32) {
    %c0_i32 = arith.constant 0 : i32
    %c0_i32_0 = arith.constant 0 : i32
    return %arg0, %c0_i32, %arg1 : i32, i32, i32
  }
}

</mosaic_0001>

<llo_original>
// kernel: tpu_custom_call.1
$region0: #{tpu_custom_call.1}
  #allocation0 [shape = 'u32[]', space=smem, size = 0x4, offset = 0x4, fixed_abs, tag = 'smem constant byte address 0x4 - core index']
  #allocation1 [shape = 'u32[144,128]{1,0:T(1,128)}', space=vmem, size = 0x12000, scoped, tag = 'internal scratch']
  #allocation2 [shape = 's32[1]{0}', space=sflag, size = 0x4, scoped, tag = 'scoped memory for tpu_custom_call.1']
  #allocation3 [shape = 'u8[512]{0}', space=smem, size = 0x200, scoped, tag = 'prefetched SMEM operand 0']
  %s0 = inlined_call_operand.hbm [shape: f32[4], index: 0, kind: input, shape index: {}]
  %s1 = inlined_call_operand.hbm [shape: f32[2,4,512], index: 1, kind: input, shape index: {}]
  %s2 = inlined_call_operand.hbm [shape: f32[2,4,512], index: 2, kind: input, shape index: {}]
  %s3 = inlined_call_operand.hbm [shape: f32[2,4,512], index: 3, kind: output, shape index: {}]
  %s4 = sld [smem:[#allocation0]]
  $region49: #{tpu_custom_call.1} parent=0
    _
  %s6 = ssub.s32 1, %s4
  %s7 = scalar_select 0, %s6, %s4
  %9 = dma.hbm_to_smem %s0, 16, [#allocation3], [#allocation2]
  %10 = dma.done [#allocation2], 16
  %11 = sfence
  $region1: #{tpu_custom_call.1} parent=0
    #allocation4 [shape = 'u8[16384]{0}', space=vmem, size = 0x4000, scoped, tag = 'input window, operand 1']
    #allocation5 [shape = 's32[2]{0}', space=sflag, size = 0x8, scoped, tag = 'scoped memory for tpu_custom_call.1']
    #allocation6 [shape = 's32[2]{0}', space=sflag, size = 0x8, scoped, tag = 'scoped memory for tpu_custom_call.1']
    #allocation7 [shape = 'u8[16384]{0}', space=vmem, size = 0x4000, scoped, tag = 'input window, operand 2']
    #allocation8 [shape = 's32[2]{0}', space=sflag, size = 0x8, scoped, tag = 'scoped memory for tpu_custom_call.1']
    #allocation9 [shape = 'u8[16384]{0}', space=vmem, size = 0x4000, scoped, tag = 'output window, operand 0']
    %12 = vsyncpa [#allocation5], 0
    %s13 = scalar_lea.sflag [#allocation5], 1
    %14 = vsyncpa %s13, 0
    %15 = vsyncpa [#allocation8], 0
    %s16 = scalar_lea.sflag [#allocation8], 1
    %17 = vsyncpa %s16, 0
    %18 = vsyncpa [#allocation6], 0
    %s19 = scalar_lea.sflag [#allocation6], 1
    %20 = vsyncpa %s19, 0
    loop: start=0, step=1, limit=4
    $region2: #{tpu_custom_call.1} parent=1 // loop_pre_header
      _
    $region3: #{tpu_custom_call.1} parent=1 // loop_header
      %s22 = sphi 0, %s26
      %p23 = scmp.ge.s32.totalorder %s22, 4
      %s29 = sphi 0, %s41
      %s30 = sphi 0, %s37
      %s31 = sphi 0, %s29
      %s32 = sphi 0, %s30
      %s33 = sphi 0, %s31
      %s34 = sphi 0, %s32
      %s46 = sphi 0, %s48
      %s49 = sphi 0, %s46
      %s50 = sphi 0, %s49
      %s66 = sphi 0, %s50
      %s74 = sphi 0, %s76
      %s77 = sphi 0, %s74
      %s78 = sphi 0, %s77
      %s94 = sphi 0, %s78
      %s102 = sphi 0, %s104
      %s105 = sphi 0, %s102
      %s106 = sphi 0, %s105
      %s122 = sphi 0, %s106
    $region4: #{tpu_custom_call.1} parent=1 // loop_header_branch
      %25 = sbr.rel (%p23) target = $region8
    $region5: #{tpu_custom_call.1} parent=1 // loop_body
      %s27 = ssub.s32 %s22, 1
      %s28 = ssub.s32 %s22, 2
      %s35 = sadd.s32 1, %s30
      %p36 = scmp.ge.s32.totalorder %s35, 1
      %s37 = scalar_select %p36, 0, %s35
      %s38 = sadd.s32 1, %s29
      %s39 = scalar_select %p36, %s38, %s29
      %p40 = scmp.ge.s32.totalorder %s39, 2
      %s41 = scalar_select %p40, 0, %s39
      %s42 = ssub.s32 %s29, %s41
      %s43 = ssub.s32 %s30, %s37
      %s44 = sor.u32 %s42, %s43
      %p45 = scmp.eq.s32.totalorder %s44, 0
      %s47 = sadd.s32 %s46, 1
      %s48 = scalar_select %p45, %s46, %s47
      %p51 = pneg %p45
      %p52 = scmp.eq.s32.totalorder %s22, 1
      %p53 = por %p51, %p52
      %p54 = scmp.ne.s32.totalorder %s46, %s49
      %p55 = scmp.eq.s32.totalorder %s22, 0
      %p56 = por %p54, %p55
      %p57 = scmp.ne.s32.totalorder %s46, %s49
      %p58 = scmp.eq.s32.totalorder %s27, 1
      %p59 = por %p57, %p58
      %p60 = scmp.ne.s32.totalorder %s49, %s50
      %p61 = scmp.eq.s32.totalorder %s27, 0
      %p62 = por %p60, %p61
      %p63 = scmp.ne.s32.totalorder %s49, %s50
      %p64 = scmp.eq.s32.totalorder %s28, 1
      %p65 = por %p63, %p64
      %p67 = scmp.ne.s32.totalorder %s50, %s66
      %p68 = scmp.eq.s32.totalorder %s28, 0
      %p69 = por %p67, %p68
      %s70 = ssub.s32 %s29, %s41
      %s71 = ssub.s32 %s30, %s37
      %s72 = sor.u32 %s70, %s71
      %p73 = scmp.eq.s32.totalorder %s72, 0
      %s75 = sadd.s32 %s74, 1
      %s76 = scalar_select %p73, %s74, %s75
      %p79 = pneg %p73
      %p80 = scmp.eq.s32.totalorder %s22, 1
      %p81 = por %p79, %p80
      %p82 = scmp.ne.s32.totalorder %s74, %s77
      %p83 = scmp.eq.s32.totalorder %s22, 0
      %p84 = por %p82, %p83
      %p85 = scmp.ne.s32.totalorder %s74, %s77
      %p86 = scmp.eq.s32.totalorder %s27, 1
      %p87 = por %p85, %p86
      %p88 = scmp.ne.s32.totalorder %s77, %s78
      %p89 = scmp.eq.s32.totalorder %s27, 0
      %p90 = por %p88, %p89
      %p91 = scmp.ne.s32.totalorder %s77, %s78
      %p92 = scmp.eq.s32.totalorder %s28, 1
      %p93 = por %p91, %p92
      %p95 = scmp.ne.s32.totalorder %s78, %s94
      %p96 = scmp.eq.s32.totalorder %s28, 0
      %p97 = por %p95, %p96
      %s98 = ssub.s32 %s29, %s41
      %s99 = ssub.s32 %s30, %s37
      %s100 = sor.u32 %s98, %s99
      %p101 = scmp.eq.s32.totalorder %s100, 0
      %s103 = sadd.s32 %s102, 1
      %s104 = scalar_select %p101, %s102, %s103
      %p107 = pneg %p101
      %p108 = scmp.eq.s32.totalorder %s22, 1
      %p109 = por %p107, %p108
      %p110 = scmp.ne.s32.totalorder %s102, %s105
      %p111 = scmp.eq.s32.totalorder %s22, 0
      %p112 = por %p110, %p111
      %p113 = scmp.ne.s32.totalorder %s102, %s105
      %p114 = scmp.eq.s32.totalorder %s27, 1
      %p115 = por %p113, %p114
      %p116 = scmp.ne.s32.totalorder %s105, %s106
      %p117 = scmp.eq.s32.totalorder %s27, 0
      %p118 = por %p116, %p117
      %p119 = scmp.ne.s32.totalorder %s105, %s106
      %p120 = scmp.eq.s32.totalorder %s28, 1
      %p121 = por %p119, %p120
      %p123 = scmp.ne.s32.totalorder %s106, %s122
      %p124 = scmp.eq.s32.totalorder %s28, 0
      %p125 = por %p123, %p124
      %p126 = scmp.le.s32.totalorder 1, %s22
      %p127 = scmp.lt.s32.totalorder %s22, 3
      %p128 = pnand %p126, %p127
      %p129 = pneg %p128
      // Predicated region
      $region9: #{tpu_custom_call.1} parent=5 // pred_check
        _
      $region10: #{tpu_custom_call.1} parent=5 // pred_check_branch
        %131 = sbr.rel (%p128) target = $region12
      $region11: #{tpu_custom_call.1} parent=5 // pred_region
        %s132 = ssub.s32 %s22, 1
      $region12: #{tpu_custom_call.1} parent=5 // pred_fallthru
        _
      %p133 = scmp.lt.s32.totalorder %s22, 2
      // Predicated region
      $region13: #{tpu_custom_call.1} parent=5 // pred_check
        %p134 = pneg %p133
      $region14: #{tpu_custom_call.1} parent=5 // pred_check_branch
        %136 = sbr.rel (%p134) target = $region16
      $region15: #{tpu_custom_call.1} parent=5 // pred_region
        // Predicated region
        $region17: #{tpu_custom_call.1} parent=15 // pred_check
          %p137 = pneg %p56
        $region18: #{tpu_custom_call.1} parent=15 // pred_check_branch
          %139 = sbr.rel (%p137) target = $region20
        $region19: #{tpu_custom_call.1} parent=15 // pred_region
          %s140 = sand.u32 %s46, 1
          %s141 = scalar_lea.sflag [#allocation5], %s140
          %s142 = sand.u32 %s46, 1
          %s143 = smul.addr %s142, 16
          %s144 = scalar_lea.vmem [#allocation4], %s143
          %s145 = smul.u32 4, %s30
          %s147 = ssub.s32 256, 256
          %148 = vsyncadd %s141, %s147
          %s149 = smul.addr %s29, 4
          %s150 = sadd.s32 %s145, %s149
          %s151 = smul.addr %s150, 64
          %s152 = scalar_lea.hbm %s1, %s151
          %s154 = sshll.u32 %s144, 4
          %s155 = int_to_ptr.vmem [resolvable:$true] %s154
          %157 = dma.hbm_to_vmem [thread:$0]  %s152, 256, %s155, %s141
        $region20: #{tpu_custom_call.1} parent=15 // pred_fallthru
          _
        // Predicated region
        $region21: #{tpu_custom_call.1} parent=15 // pred_check
          %p158 = pneg %p84
        $region22: #{tpu_custom_call.1} parent=15 // pred_check_branch
          %160 = sbr.rel (%p158) target = $region24
        $region23: #{tpu_custom_call.1} parent=15 // pred_region
          %s161 = sand.u32 %s74, 1
          %s162 = scalar_lea.sflag [#allocation8], %s161
          %s163 = sand.u32 %s74, 1
          %s164 = smul.addr %s163, 16
          %s165 = scalar_lea.vmem [#allocation7], %s164
          %s166 = smul.u32 4, %s30
          %s168 = ssub.s32 256, 256
          %169 = vsyncadd %s162, %s168
          %s170 = smul.addr %s29, 4
          %s171 = sadd.s32 %s166, %s170
          %s172 = smul.addr %s171, 64
          %s173 = scalar_lea.hbm %s2, %s172
          %s175 = sshll.u32 %s165, 4
          %s176 = int_to_ptr.vmem [resolvable:$true] %s175
          %178 = dma.hbm_to_vmem [thread:$0]  %s173, 256, %s176, %s162
        $region24: #{tpu_custom_call.1} parent=15 // pred_fallthru
          _
      $region16: #{tpu_custom_call.1} parent=5 // pred_fallthru
        _
      %p179 = scmp.le.s32.totalorder 1, %s22
      %p180 = scmp.lt.s32.totalorder %s22, 3
      %p181 = pnand %p179, %p180
      %p182 = pneg %p181
      // Predicated region
      $region25: #{tpu_custom_call.1} parent=5 // pred_check
        _
      $region26: #{tpu_custom_call.1} parent=5 // pred_check_branch
        %184 = sbr.rel (%p181) target = $region28
      $region27: #{tpu_custom_call.1} parent=5 // pred_region
        %s185 = ssub.s32 %s22, 1
        %s186 = sand.u32 %s49, 1
        %s187 = scalar_lea.sflag [#allocation5], %s186
        %s188 = sand.u32 %s49, 1
        %s189 = smul.addr %s188, 16
        %s190 = scalar_lea.vmem [#allocation4], %s189
        // Predicated region
        $region29: #{tpu_custom_call.1} parent=27 // pred_check
          %p191 = pneg %p62
        $region30: #{tpu_custom_call.1} parent=27 // pred_check_branch
          %193 = sbr.rel (%p191) target = $region32
        $region31: #{tpu_custom_call.1} parent=27 // pred_region
          %194 = dma.done %s187, 256
        $region32: #{tpu_custom_call.1} parent=27 // pred_fallthru
          _
        %s195 = sand.u32 %s77, 1
        %s196 = scalar_lea.sflag [#allocation8], %s195
        %s197 = sand.u32 %s77, 1
        %s198 = smul.addr %s197, 16
        %s199 = scalar_lea.vmem [#allocation7], %s198
        // Predicated region
        $region33: #{tpu_custom_call.1} parent=27 // pred_check
          %p200 = pneg %p90
        $region34: #{tpu_custom_call.1} parent=27 // pred_check_branch
          %202 = sbr.rel (%p200) target = $region36
        $region35: #{tpu_custom_call.1} parent=27 // pred_region
          %203 = dma.done %s196, 256
        $region36: #{tpu_custom_call.1} parent=27 // pred_fallthru
          _
        %s204 = sand.u32 %s49, 1
        %s205 = scalar_lea.sflag [#allocation5], %s204
        %s206 = sand.u32 %s49, 1
        %s207 = smul.addr %s206, 16
        %s208 = scalar_lea.vmem [#allocation4], %s207
        %p209 = pneg %p62
        %p210 = pneg %p59
        %s211 = sand.u32 %s77, 1
        %s212 = scalar_lea.sflag [#allocation8], %s211
        %s213 = sand.u32 %s77, 1
        %s214 = smul.addr %s213, 16
        %s215 = scalar_lea.vmem [#allocation7], %s214
        %p216 = pneg %p90
        %p217 = pneg %p87
        %p218 = pneg %p118
        %p219 = pneg %p115
        %s220 = sand.u32 %s105, 1
        %s221 = scalar_lea.sflag [#allocation6], %s220
        %s222 = sand.u32 %s105, 1
        %s223 = smul.addr %s222, 16
        %s224 = scalar_lea.vmem [#allocation9], %s223
        %s225 = smul.u32 4, %s32
        %s226 = smul.u32 4, %s32
        %s227 = smul.u32 4, %s32
        %s228 = sld [smem:[#allocation3]]
        %s229 = sld [smem:[#allocation3 + $0x1]]
        %s230 = sld [smem:[#allocation3 + $0x2]]
        %s231 = sld [smem:[#allocation3 + $0x3]]
        %v232 = vld [vmem:[%s190] sm:$0xff]
        %v233 = vld [vmem:[%s190 + $0x8] sm:$0xff]
        %v234 = vld [vmem:[%s199] sm:$0xff]
        %v235 = vld [vmem:[%s199 + $0x8] sm:$0xff]
        %v236 = vmul.f32 %v232, %v234
        %v237 = vmul.f32 %v233, %v235
        %v240 = vcombine.high %v236, %v236
        %v241 = vcombine.high %v237, %v237
        %vm244 = vcmask 1043456
        %v245 = vsel %vm244, %v236, 0.0
        %v246 = vrot.slane %v245, 4
        %v247 = vadd.f32 %v245, %v246
        %v248 = vrot.slane %v247, 2
        %v249 = vadd.f32 %v247, %v248
        %v250 = vrot.slane %v249, 1
        %v251 = vadd.f32 %v249, %v250
        %v252 = vsel %vm244, %v240, 0.0
        %v253 = vrot.slane %v252, 4
        %v254 = vadd.f32 %v252, %v253
        %v255 = vrot.slane %v254, 2
        %v256 = vadd.f32 %v254, %v255
        %v257 = vrot.slane %v256, 1
        %v258 = vadd.f32 %v256, %v257
        %v259 = vsel %vm244, %v237, 0.0
        %v260 = vrot.slane %v259, 4
        %v261 = vadd.f32 %v259, %v260
        %v262 = vrot.slane %v261, 2
        %v263 = vadd.f32 %v261, %v262
        %v264 = vrot.slane %v263, 1
        %v265 = vadd.f32 %v263, %v264
        %v266 = vsel %vm244, %v241, 0.0
        %v267 = vrot.slane %v266, 4
        %v268 = vadd.f32 %v266, %v267
        %v269 = vrot.slane %v268, 2
        %v270 = vadd.f32 %v268, %v269
        %v271 = vrot.slane %v270, 1
        %v272 = vadd.f32 %v270, %v271
        %v273 = vstv %s228
        %v274 = vmul.f32 %v251, %v273
        %v275 = vmul.f32 %v258, %v273
        %v276 = vmul.f32 %v265, %v273
        %v277 = vmul.f32 %v272, %v273
        %v278 = vstv %s229
        %v279 = vadd.f32 %v274, %v278
        %v280 = vadd.f32 %v275, %v278
        %v281 = vadd.f32 %v276, %v278
        %v282 = vadd.f32 %v277, %v278
        %v283 = vxor.u32 %v279, 2147483648
        %v284 = vxor.u32 %v280, 2147483648
        %v285 = vxor.u32 %v281, 2147483648
        %v286 = vxor.u32 %v282, 2147483648
        %v287 = vmul.f32 %v283, 1.442695
        %v288 = vpow.pop %v287
        %v289 = vmul.f32 %v284, 1.442695
        %v290 = vpow.pop %v289
        %v291 = vmul.f32 %v285, 1.442695
        %v292 = vpow.pop %v291
        %v293 = vmul.f32 %v286, 1.442695
        %v294 = vpow.pop %v293
        %v295 = vadd.f32 %v288, 1.0
        %v296 = vadd.f32 %v290, 1.0
        %v297 = vadd.f32 %v292, 1.0
        %v298 = vadd.f32 %v294, 1.0
        %v299 = vrcp.pop %v295
        %v300 = vmul.f32 1.0, %v299
        %v301 = vrcp.pop %v296
        %v302 = vmul.f32 1.0, %v301
        %v303 = vrcp.pop %v297
        %v304 = vmul.f32 1.0, %v303
        %v305 = vrcp.pop %v298
        %v306 = vmul.f32 1.0, %v305
        %v307 = vstv %s230
        %v308 = vmul.f32 %v251, %v307
        %v309 = vmul.f32 %v258, %v307
        %v310 = vmul.f32 %v265, %v307
        %v311 = vmul.f32 %v272, %v307
        %v312 = vstv %s231
        %v313 = vadd.f32 %v308, %v312
        %v314 = vadd.f32 %v309, %v312
        %v315 = vadd.f32 %v310, %v312
        %v316 = vadd.f32 %v311, %v312
        %v317 = vxor.u32 %v313, 2147483648
        %v318 = vxor.u32 %v314, 2147483648
        %v319 = vxor.u32 %v315, 2147483648
        %v320 = vxor.u32 %v316, 2147483648
        %v321 = vmul.f32 %v317, 1.442695
        %v322 = vpow.pop %v321
        %v323 = vmul.f32 %v318, 1.442695
        %v324 = vpow.pop %v323
        %v325 = vmul.f32 %v319, 1.442695
        %v326 = vpow.pop %v325
        %v327 = vmul.f32 %v320, 1.442695
        %v328 = vpow.pop %v327
        %v329 = vadd.f32 %v322, 1.0
        %v330 = vadd.f32 %v324, 1.0
        %v331 = vadd.f32 %v326, 1.0
        %v332 = vadd.f32 %v328, 1.0
        %v333 = vrcp.pop %v329
        %v334 = vmul.f32 1.0, %v333
        %v335 = vrcp.pop %v330
        %v336 = vmul.f32 1.0, %v335
        %v337 = vrcp.pop %v331
        %v338 = vmul.f32 1.0, %v337
        %v339 = vrcp.pop %v332
        %v340 = vmul.f32 1.0, %v339
        %v345 = vcombine.low %v300, %v302
        %v346 = vcombine.low %v304, %v306
        %v349 = vmul.f32 %v232, %v345
        %v350 = vmul.f32 %v233, %v346
        %v355 = vcombine.low %v334, %v336
        %v356 = vcombine.low %v338, %v340
        %v359 = vmul.f32 %v234, %v355
        %v360 = vmul.f32 %v235, %v356
        %v361 = vadd.f32 %v349, %v359
        %v362 = vadd.f32 %v350, %v360
        %363 = vst [vmem:[%s224] sm:$0xff] %v361
        %364 = vst [vmem:[%s224 + $0x8] sm:$0xff] %v362
        %s365 = sand.u32 %s105, 1
        %s366 = scalar_lea.sflag [#allocation6], %s365
        %s367 = sand.u32 %s105, 1
        %s368 = smul.addr %s367, 16
        %s369 = scalar_lea.vmem [#allocation9], %s368
        // Predicated region
        $region37: #{tpu_custom_call.1} parent=27 // pred_check
          %p370 = pneg %p115
        $region38: #{tpu_custom_call.1} parent=27 // pred_check_branch
          %372 = sbr.rel (%p370) target = $region40
        $region39: #{tpu_custom_call.1} parent=27 // pred_region
          %s373 = smul.u32 4, %s32
          %s375 = ssub.s32 256, 256
          %376 = vsyncadd %s366, %s375
          %s377 = smul.addr %s31, 4
          %s378 = sadd.s32 %s373, %s377
          %s379 = smul.addr %s378, 64
          %s380 = scalar_lea.hbm %s3, %s379
          %s382 = sshll.u32 %s369, 4
          %s383 = int_to_ptr.vmem [resolvable:$true] %s382
          %385 = dma.vmem_to_hbm [thread:$0]  %s383, 256, %s380, %s366
        $region40: #{tpu_custom_call.1} parent=27 // pred_fallthru
          _
      $region28: #{tpu_custom_call.1} parent=5 // pred_fallthru
        _
      %p386 = scmp.le.s32.totalorder 2, %s22
      // Predicated region
      $region41: #{tpu_custom_call.1} parent=5 // pred_check
        %p387 = pneg %p386
      $region42: #{tpu_custom_call.1} parent=5 // pred_check_branch
        %389 = sbr.rel (%p387) target = $region44
      $region43: #{tpu_custom_call.1} parent=5 // pred_region
        %s390 = ssub.s32 %s22, 2
        // Predicated region
        $region45: #{tpu_custom_call.1} parent=43 // pred_check
          %p391 = pneg %p121
        $region46: #{tpu_custom_call.1} parent=43 // pred_check_branch
          %393 = sbr.rel (%p391) target = $region48
        $region47: #{tpu_custom_call.1} parent=43 // pred_region
          %s394 = sand.u32 %s106, 1
          %s395 = scalar_lea.sflag [#allocation6], %s394
          %s396 = sand.u32 %s106, 1
          %s397 = smul.addr %s396, 16
          %s398 = scalar_lea.vmem [#allocation9], %s397
          %399 = dma.done %s395, 256
        $region48: #{tpu_custom_call.1} parent=43 // pred_fallthru
          _
      $region44: #{tpu_custom_call.1} parent=5 // pred_fallthru
        _
    $region6: #{tpu_custom_call.1} parent=1 // loop_footer
      %s26 = sadd.s32 1, %s22
    $region7: #{tpu_custom_call.1} parent=1 // loop_footer_branch
      %21 = sbr.rel target = $region3
    $region8: #{tpu_custom_call.1} parent=1 // loop_exit
      _
    %400 = vsyncpa [#allocation5], 1
    %s401 = scalar_lea.sflag [#allocation5], 1
    %402 = vsyncpa %s401, 1
    %403 = vsyncpa [#allocation8], 1
    %s404 = scalar_lea.sflag [#allocation8], 1
    %405 = vsyncpa %s404, 1
    %406 = vsyncpa [#allocation6], 1
    %s407 = scalar_lea.sflag [#allocation6], 1
    %408 = vsyncpa %s407, 1

</llo_original>
